<compile_context>
chip_gen: v7x
topology: tpu7x:2x2x1
jax: 0.10.0
libtpu: 0.0.40
codegen_flags: <defaults>
</compile_context>

<pallas_src>
import jax
import jax.numpy as jnp
from jax.experimental import pallas as pl
from jax.experimental.pallas import tpu as pltpu

LANES = 128                    # last dim stays lane-dense -> unmasked vector stores
TARGET_TILE_BYTES = 2 << 20    # ~2 MiB per buffer; 2 operands x 2 buffers ~= 8 MiB VMEM


def copy_kernel(x_ref, o_ref):
    # Pure memcpy tile: HBM -> VMEM -> HBM, double-buffered by the BlockSpec pipeline.
    o_ref[...] = x_ref[...]


def _sublane_pack(dtype) -> int:
    # Native sublane packing: 8 rows for 4-byte, 16 for 2-byte, 32 for 1-byte dtypes.
    itemsize = jnp.dtype(dtype).itemsize
    return max(8, 32 // itemsize)


def _block_rows(rows: int, dtype) -> int:
    """Fixed row-tile sized for ~TARGET_TILE_BYTES per buffer, aligned to the
    dtype's packed sublane tile.  If the whole array is smaller than one tile,
    use the full extent (block shape == full array dims is always legal)."""
    itemsize = jnp.dtype(dtype).itemsize
    pack = _sublane_pack(dtype)
    bm = TARGET_TILE_BYTES // (LANES * itemsize)
    bm = max(pack, (bm // pack) * pack)
    return rows if rows <= bm else bm


def flatten(x):
    """Pallas materialization of x.reshape(-1).

    NOTE: the cheapest correct implementation is `return x.reshape(-1)` (a
    metadata-only reshape, zero HBM traffic).  This wrapper runs the tiled copy
    kernel so the flattened buffer is explicitly materialized via pallas_call.
    """
    n = x.size
    itemsize = jnp.dtype(x.dtype).itemsize

    flat = x.reshape(-1)                 # trace-level reshape: free
    pad = (-n) % LANES
    if pad:
        # Pad to a lane multiple so the kernel path is always (rows, 128);
        # the tail is sliced off after the copy.
        flat = jnp.pad(flat, (0, pad))

    rows = flat.size // LANES
    x2 = flat.reshape(rows, LANES)

    bm = _block_rows(rows, x.dtype)
    grid = (pl.cdiv(rows, bm),)          # partial last block is masked by Pallas

    out2 = pl.pallas_call(
        copy_kernel,
        out_shape=jax.ShapeDtypeStruct((rows, LANES), x.dtype),
        grid_spec=pltpu.PrefetchScalarGridSpec(
            num_scalar_prefetch=0,
            grid=grid,
            in_specs=[pl.BlockSpec((bm, LANES), lambda i: (i, 0))],
            out_specs=pl.BlockSpec((bm, LANES), lambda i: (i, 0)),
        ),
        compiler_params=pltpu.CompilerParams(
            dimension_semantics=("parallel",),   # independent tiles -> megacore-shardable
            vmem_limit_bytes=32 << 20,           # headroom for 2 ops x 2 bufs, safe on all gens
        ),
        cost_estimate=pl.CostEstimate(
            flops=0,
            transcendentals=0,
            bytes_accessed=2 * rows * LANES * itemsize,  # read + write, mem-bound
        ),
    )(x2)

    out = out2.reshape(-1)
    return out[:n] if pad else out
    # TODO(synk): for a fully zero-cost flatten, return x.reshape(-1) directly
    # (or alias input->output with memory_space=pl.ANY) instead of copying.


if __name__ == "__main__":
    key = jax.random.PRNGKey(0)

    # Small 4-D input consistent with a conv feature map: (batch, C, H, W).
    x = jax.random.normal(key, (2, 4, 16, 16), dtype=jnp.float32)
    out = flatten(x)
    jax.block_until_ready(out)
    assert out.shape == (x.size,)
    assert jnp.array_equal(out, x.reshape(-1))

    # Exercise the n % 128 != 0 path (padded + sliced), never a (1, n) block.
    x_odd = jax.random.normal(jax.random.PRNGKey(0), (3, 5, 7), dtype=jnp.float32)
    out_odd = flatten(x_odd)
    jax.block_until_ready(out_odd)
    assert out_odd.shape == (x_odd.size,)
    assert jnp.array_equal(out_odd, x_odd.reshape(-1))

    print("KERNEL_OK")
</pallas_src>

<mosaic_0001>
module attributes {stable_mosaic.version = 11 : i64} {
  func.func @copy_kernel(%arg0: i32, %arg1: memref<16x128xf32, #tpu.memory_space<vmem>>, %arg2: memref<16x128xf32, #tpu.memory_space<vmem>>) attributes {dimension_semantics = [#tpu.dimension_semantics<parallel>], iteration_bounds = array<i64: 1>, scalar_prefetch = 0 : i64, scratch_operands = 0 : i64, tpu.core_type = #tpu.core_type<tc>, window_params = [{transform_indices = @transform_0, window_bounds = array<i64: 16, 128>}, {transform_indices = @transform_1, window_bounds = array<i64: 16, 128>}]} {
    %c0 = arith.constant 0 : index
    %c0_0 = arith.constant 0 : index
    %0 = vector.load %arg1[%c0, %c0_0] : memref<16x128xf32, #tpu.memory_space<vmem>>, vector<16x128xf32>
    %c0_1 = arith.constant 0 : index
    %c0_2 = arith.constant 0 : index
    %1 = vector.load %arg2[%c0_1, %c0_2] : memref<16x128xf32, #tpu.memory_space<vmem>>, vector<16x128xf32>
    tpu.vector_store %arg2[%c0_1, %c0_2], %0 {strides = array<i32>} : memref<16x128xf32, #tpu.memory_space<vmem>>, vector<16x128xf32>,
    return
  }
  func.func @transform_0(%arg0: i32) -> (i32, i32) {
    %c0_i32 = arith.constant 0 : i32
    %c0_i32_0 = arith.constant 0 : i32
    return %arg0, %c0_i32 : i32, i32
  }
  func.func @transform_1(%arg0: i32) -> (i32, i32) {
    %c0_i32 = arith.constant 0 : i32
    %c0_i32_0 = arith.constant 0 : i32
    return %arg0, %c0_i32 : i32, i32
  }
}

</mosaic_0001>

<llo_original>
// kernel: tpu_custom_call.1
$region0: #{tpu_custom_call.1}
  #allocation0 [shape = 'u32[]', space=smem, size = 0x4, offset = 0x4, fixed_abs, tag = 'smem constant byte address 0x4 - core index']
  #allocation1 [shape = 'u32[144,128]{1,0:T(1,128)}', space=vmem, size = 0x12000, scoped, tag = 'internal scratch']
  %s0 = inlined_call_operand.hbm [shape: f32[16,128], index: 0, kind: input, shape index: {}]
  %s1 = inlined_call_operand.hbm [shape: f32[16,128], index: 1, kind: output, shape index: {}]
  %s2 = sld [smem:[#allocation0]]
  $region18: #{tpu_custom_call.1} parent=0
    _
  %s4 = ssub.s32 1, %s2
  %s5 = scalar_select 0, %s4, %s2
  $region1: #{tpu_custom_call.1} parent=0
    #allocation2 [shape = 'u8[8192]{0}', space=vmem, size = 0x2000, scoped, tag = 'input window, operand 0, single buffered']
    #allocation3 [shape = 's32[1]{0}', space=sflag, size = 0x4, scoped, tag = 'scoped memory for tpu_custom_call.1']
    #allocation4 [shape = 's32[1]{0}', space=sflag, size = 0x4, scoped, tag = 'scoped memory for tpu_custom_call.1']
    #allocation5 [shape = 'u8[8192]{0}', space=vmem, size = 0x2000, scoped, tag = 'output window, operand 0, single buffered']
    %6 = vsyncpa [#allocation3], 0
    %7 = vsyncpa [#allocation4], 0
    // Predicated region
    $region2: #{tpu_custom_call.1} parent=1 // pred_check
      _
    $region3: #{tpu_custom_call.1} parent=1 // pred_check_branch
      %9 = sbr.rel (0) target = $region5
    $region4: #{tpu_custom_call.1} parent=1 // pred_region
      %s11 = ssub.s32 256, 256
      %12 = vsyncadd [#allocation3], %s11
      %s13 = sshll.u32 [#allocation2], 4
      %s14 = int_to_ptr.vmem [resolvable:$true] %s13
      %19 = dma.hbm_to_vmem [thread:$0]  %s0, 256, %s14, [#allocation3], 128, 128, 8
    $region5: #{tpu_custom_call.1} parent=1 // pred_fallthru
      _
    // Predicated region
    $region6: #{tpu_custom_call.1} parent=1 // pred_check
      _
    $region7: #{tpu_custom_call.1} parent=1 // pred_check_branch
      %21 = sbr.rel (0) target = $region9
    $region8: #{tpu_custom_call.1} parent=1 // pred_region
      %22 = dma.done [#allocation3], 256
    $region9: #{tpu_custom_call.1} parent=1 // pred_fallthru
      _
    %v23 = vld [vmem:[#allocation2] sm:$0xff]
    %v24 = vld [vmem:[#allocation2 + $0x8] sm:$0xff]
    %25 = vst [vmem:[#allocation5] sm:$0xff] %v23
    %26 = vst [vmem:[#allocation5 + $0x8] sm:$0xff] %v24
    // Predicated region
    $region10: #{tpu_custom_call.1} parent=1 // pred_check
      _
    $region11: #{tpu_custom_call.1} parent=1 // pred_check_branch
      %28 = sbr.rel (0) target = $region13
    $region12: #{tpu_custom_call.1} parent=1 // pred_region
      %s30 = ssub.s32 256, 256
      %31 = vsyncadd [#allocation4], %s30
      %s32 = sshll.u32 [#allocation5], 4
      %s33 = int_to_ptr.vmem [resolvable:$true] %s32
      %38 = dma.vmem_to_hbm [thread:$0]  %s33, 256, %s1, [#allocation4], 128, 128, 8
    $region13: #{tpu_custom_call.1} parent=1 // pred_fallthru
      _
    // Predicated region
    $region14: #{tpu_custom_call.1} parent=1 // pred_check
      _
    $region15: #{tpu_custom_call.1} parent=1 // pred_check_branch
      %40 = sbr.rel (0) target = $region17
    $region16: #{tpu_custom_call.1} parent=1 // pred_region
      %41 = dma.done [#allocation4], 256
    $region17: #{tpu_custom_call.1} parent=1 // pred_fallthru
      _
    %42 = vsyncpa [#allocation3], 1
    %43 = vsyncpa [#allocation4], 1

</llo_original>
